<compile_context>
chip_gen: v7x
topology: tpu7x:2x2x1
jax: 0.10.0
libtpu: 0.0.40
codegen_flags: <defaults>
</compile_context>

<pallas_src>
import functools

import jax
import jax.numpy as jnp
from jax import lax
from jax.experimental import pallas as pl
from jax.experimental.pallas import tpu as pltpu


def _round_up(a: int, b: int) -> int:
    return ((a + b - 1) // b) * b


def _choose_tf(F: int) -> int:
    """Feature tile: multiple of 128 (lane dense) or full F when F < 128.

    Prefers >= 2 feature tiles whenever F > 128 so the 'parallel' F axis can be
    sharded across both TensorCores on v7x."""
    if F <= 128:
        return F if F < 128 else 128
    for tf in (512, 256, 128):
        if F > tf:
            return tf
    return 128


def _fused_tile_f(N: int, F: int, x_bytes: int, out_bytes: int,
                  budget: int = 16 * 1024 * 1024):
    """Largest feature tile for which the fused (N, TF) in+out stripes (double buffered)
    fit a conservative VMEM budget.  None -> use the two-pass path."""
    def need(tf):
        return 2 * N * tf * (x_bytes + out_bytes)
    tf = _choose_tf(F)
    while need(tf) > budget:
        if tf <= 128 or F < 128:
            return None
        tf //= 2
    return tf


# ---------------------------------------------------------------------------
# Fused single-pass kernel: one (N, TF) feature stripe resident in VMEM.
# grid = (F_tiles,), 1 read + 1 write of x.
# ---------------------------------------------------------------------------
def _fused_kernel(x_ref, rm_ref, rv_ref, w_ref, b_ref,
                  out_ref, new_rm_ref, new_rv_ref,
                  *, eps: float, momentum: float, whole_size: float):
    x = x_ref[...].astype(jnp.float32)                    # (N, TF)
    sum_x = jnp.sum(x, axis=0, keepdims=True)             # (1, TF)
    sum_x2 = jnp.sum(x * x, axis=0, keepdims=True)

    inv_n = jnp.float32(1.0 / whole_size)
    mean = sum_x * inv_n
    # NOTE: E[x^2] - mean*sum formula kept to match the reference exactly (no clamp).
    var = (sum_x2 - mean * sum_x) * inv_n
    inv_std = lax.rsqrt(var + jnp.float32(eps))

    w = w_ref[...].astype(jnp.float32)
    b = b_ref[...].astype(jnp.float32)
    scale = w * inv_std                                    # folded affine
    shift = b - mean * scale
    out_ref[...] = (x * scale + shift).astype(out_ref.dtype)

    m = jnp.float32(momentum)
    rm = rm_ref[...].astype(jnp.float32)
    rv = rv_ref[...].astype(jnp.float32)
    new_rm_ref[...] = (rm * (1.0 - m) + mean * m).astype(new_rm_ref.dtype)
    new_rv_ref[...] = (rv * (1.0 - m) + var * m).astype(new_rv_ref.dtype)


# ---------------------------------------------------------------------------
# Two-pass path, pass 1: per-feature statistics -> folded affine + EMA update.
# grid = (F_tiles, N_tiles), reduction over N ("arbitrary", last grid axis).
# ---------------------------------------------------------------------------
def _stats_kernel(x_ref, rm_ref, rv_ref, w_ref, b_ref,
                  scale_ref, shift_ref, new_rm_ref, new_rv_ref,
                  acc_sum_ref, acc_sq_ref,
                  *, eps: float, momentum: float, n_rows: int, tn: int, ragged_n: bool):
    k = pl.program_id(1)

    @pl.when(k == 0)
    def _init():
        acc_sum_ref[...] = jnp.zeros_like(acc_sum_ref)
        acc_sq_ref[...] = jnp.zeros_like(acc_sq_ref)

    x = x_ref[...].astype(jnp.float32)                     # (TN, TF)
    if ragged_n:
        # Mask rows beyond N (partial last N-block reads unspecified values).
        row = k * tn + lax.broadcasted_iota(jnp.int32, (tn, 1), 0)
        x = jnp.where(row < n_rows, x, jnp.float32(0.0))

    # (8, TF) accumulators: per-step accumulation is pure VPU vreg adds; the
    # cross-sublane (XLU) reduce happens only once, at finalize.
    xr = x.reshape(tn // 8, 8, x.shape[-1])
    acc_sum_ref[...] += jnp.sum(xr, axis=0)
    acc_sq_ref[...] += jnp.sum(xr * xr, axis=0)

    @pl.when(k == pl.num_programs(1) - 1)
    def _finalize():
        sum_x = jnp.sum(acc_sum_ref[...], axis=0, keepdims=True)    # (1, TF)
        sum_x2 = jnp.sum(acc_sq_ref[...], axis=0, keepdims=True)
        inv_n = jnp.float32(1.0 / n_rows)
        mean = sum_x * inv_n
        var = (sum_x2 - mean * sum_x) * inv_n
        inv_std = lax.rsqrt(var + jnp.float32(eps))

        w = w_ref[...].astype(jnp.float32)
        b = b_ref[...].astype(jnp.float32)
        scale = w * inv_std
        shift = b - mean * scale
        scale_ref[...] = scale
        shift_ref[...] = shift

        m = jnp.float32(momentum)
        rm = rm_ref[...].astype(jnp.float32)
        rv = rv_ref[...].astype(jnp.float32)
        new_rm_ref[...] = (rm * (1.0 - m) + mean * m).astype(new_rm_ref.dtype)
        new_rv_ref[...] = (rv * (1.0 - m) + var * m).astype(new_rv_ref.dtype)


# ---------------------------------------------------------------------------
# Two-pass path, pass 2: out = x * scale + shift (streams x once, f32 math).
# ---------------------------------------------------------------------------
def _apply_kernel(x_ref, scale_ref, shift_ref, out_ref):
    x = x_ref[...].astype(jnp.float32)
    out_ref[...] = (x * scale_ref[...] + shift_ref[...]).astype(out_ref.dtype)


def sync_batch_norm(x, running_mean, running_var, weight, bias,
                    eps: float = 1e-5, momentum: float = 0.1,
                    *, force_two_pass: bool = False):
    """Training-mode SyncBatchNorm forward.  Returns (out, new_running_mean, new_running_var)."""
    N, F = x.shape
    assert N > 0, "empty batch not supported in this kernel"

    rm2 = running_mean.reshape(1, F)
    rv2 = running_var.reshape(1, F)
    w2 = weight.reshape(1, F)
    b2 = bias.reshape(1, F)

    out_dtype = x.dtype
    x_bytes = x.dtype.itemsize
    o_bytes = jnp.dtype(out_dtype).itemsize

    # ---------------- fused single-pass path (whole N stripe resident) ----------------
    tf_fused = None if force_two_pass else _fused_tile_f(N, F, x_bytes, o_bytes)
    if tf_fused is not None:
        n_f_tiles = int(pl.cdiv(F, tf_fused))
        kernel = functools.partial(_fused_kernel, eps=float(eps),
                                   momentum=float(momentum), whole_size=float(N))
        x_spec = pl.BlockSpec((N, tf_fused), lambda j: (0, j))
        p_spec = pl.BlockSpec((1, tf_fused), lambda j: (0, j))
        out, new_rm, new_rv = pl.pallas_call(
            kernel,
            out_shape=(
                jax.ShapeDtypeStruct((N, F), out_dtype),
                jax.ShapeDtypeStruct((1, F), running_mean.dtype),
                jax.ShapeDtypeStruct((1, F), running_var.dtype),
            ),
            grid_spec=pltpu.PrefetchScalarGridSpec(
                num_scalar_prefetch=0,
                grid=(n_f_tiles,),
                in_specs=[x_spec, p_spec, p_spec, p_spec, p_spec],
                out_specs=(x_spec, p_spec, p_spec),
            ),
            compiler_params=pltpu.CompilerParams(
                dimension_semantics=("parallel",),
                vmem_limit_bytes=32 * 1024 * 1024),
        )(x, rm2, rv2, w2, b2)
        return out, new_rm.reshape(F), new_rv.reshape(F)

    # ---------------- two-pass path (large N): stats then apply ----------------
    TF = _choose_tf(F)
    TN = min(2048, _round_up(N, 16))       # 16-multiple keeps bf16/int8 native tiles happy
    n_f_tiles = int(pl.cdiv(F, TF))
    n_n_tiles = int(pl.cdiv(N, TN))
    ragged_n = (N % TN) != 0

    stats_kernel = functools.partial(
        _stats_kernel, eps=float(eps), momentum=float(momentum),
        n_rows=N, tn=TN, ragged_n=ragged_n)

    x_spec = pl.BlockSpec((TN, TF), lambda j, k: (k, j))
    # (1, TF) operands: block index constant along the reduction axis -> stay VMEM resident.
    p_spec = pl.BlockSpec((1, TF), lambda j, k: (0, j))

    scale, shift, new_rm, new_rv = pl.pallas_call(
        stats_kernel,
        out_shape=(
            jax.ShapeDtypeStruct((1, F), jnp.float32),
            jax.ShapeDtypeStruct((1, F), jnp.float32),
            jax.ShapeDtypeStruct((1, F), running_mean.dtype),
            jax.ShapeDtypeStruct((1, F), running_var.dtype),
        ),
        grid_spec=pltpu.PrefetchScalarGridSpec(
            num_scalar_prefetch=0,
            grid=(n_f_tiles, n_n_tiles),
            in_specs=[x_spec, p_spec, p_spec, p_spec, p_spec],
            out_specs=(p_spec, p_spec, p_spec, p_spec),
            scratch_shapes=[pltpu.VMEM((8, TF), jnp.float32),
                            pltpu.VMEM((8, TF), jnp.float32)],
        ),
        compiler_params=pltpu.CompilerParams(
            dimension_semantics=("parallel", "arbitrary"),
            vmem_limit_bytes=32 * 1024 * 1024),
    )(x, rm2, rv2, w2, b2)

    out = pl.pallas_call(
        _apply_kernel,
        out_shape=jax.ShapeDtypeStruct((N, F), out_dtype),
        grid_spec=pltpu.PrefetchScalarGridSpec(
            num_scalar_prefetch=0,
            grid=(n_f_tiles, n_n_tiles),
            in_specs=[x_spec, p_spec, p_spec],
            out_specs=x_spec,
        ),
        compiler_params=pltpu.CompilerParams(
            dimension_semantics=("parallel", "parallel"),
            vmem_limit_bytes=32 * 1024 * 1024),
    )(x, scale, shift)

    return out, new_rm.reshape(F), new_rv.reshape(F)


# ---------------------------------------------------------------------------
# Pure-JAX reference (mirrors the PyTorch forward, single device).
# ---------------------------------------------------------------------------
def _reference(x, running_mean, running_var, weight, bias, eps, momentum):
    xf = x.astype(jnp.float32)
    n = x.shape[0]
    sum_x = xf.sum(axis=0)
    sum_x2 = (xf ** 2).sum(axis=0)
    mean = sum_x / n
    var = (sum_x2 - mean * sum_x) / n
    std = jnp.sqrt(var + eps)
    x_hat = (xf - mean) / std
    out = x_hat * weight.astype(jnp.float32) + bias.astype(jnp.float32)
    new_rm = running_mean * (1 - momentum) + mean * momentum
    new_rv = running_var * (1 - momentum) + var * momentum
    return out, new_rm, new_rv


def _run_case(key, N, F, eps, momentum, *, dtype=jnp.float32,
              force_two_pass=False, out_atol=1e-4):
    x = (jax.random.normal(key, (N, F), dtype=jnp.float32) * 2.0 + 0.5).astype(dtype)
    running_mean = jnp.zeros((F,), jnp.float32)
    running_var = jnp.ones((F,), jnp.float32)
    weight = jnp.ones((F,), jnp.float32)
    bias = jnp.zeros((F,), jnp.float32)

    out, new_rm, new_rv = sync_batch_norm(x, running_mean, running_var, weight, bias,
                                          eps, momentum, force_two_pass=force_two_pass)
    jax.block_until_ready((out, new_rm, new_rv))

    ref_out, ref_rm, ref_rv = _reference(x, running_mean, running_var,
                                         weight, bias, eps, momentum)
    assert out.shape == (N, F) and out.dtype == dtype
    assert jnp.allclose(out.astype(jnp.float32), ref_out, atol=out_atol, rtol=1e-3), \
        (N, F, dtype, "out mismatch")
    assert jnp.allclose(new_rm, ref_rm, atol=1e-5, rtol=1e-5), (N, F, "rm mismatch")
    assert jnp.allclose(new_rv, ref_rv, atol=1e-5, rtol=1e-5), (N, F, "rv mismatch")


if __name__ == "__main__":
    eps, momentum = 1e-5, 0.1
    key = jax.random.PRNGKey(0)
    k1, k2, k3, k4 = jax.random.split(key, 4)

    # Small shape consistent with the module (batch=8, num_features=32) -> fused single-pass.
    _run_case(k1, N=8, F=32, eps=eps, momentum=momentum)

    # Ragged N and F (2 feature tiles, partial edges, no padding) -> fused single-pass.
    _run_case(k2, N=300, F=200, eps=eps, momentum=momentum)

    # Force the two-pass path: multi-tile N reduction with masked partial last block.
    _run_case(k3, N=2100, F=200, eps=eps, momentum=momentum, force_two_pass=True)

    # bf16 storage, f32 compute path.
    _run_case(k4, N=64, F=256, eps=eps, momentum=momentum,
              dtype=jnp.bfloat16, out_atol=5e-2)

    print("KERNEL_OK")
</pallas_src>

<mosaic_0001>
module attributes {stable_mosaic.version = 11 : i64} {
  func.func @_fused_kernel(%arg0: i32, %arg1: memref<8x32xf32, #tpu.memory_space<vmem>>, %arg2: memref<1x32xf32, #tpu.memory_space<vmem>>, %arg3: memref<1x32xf32, #tpu.memory_space<vmem>>, %arg4: memref<1x32xf32, #tpu.memory_space<vmem>>, %arg5: memref<1x32xf32, #tpu.memory_space<vmem>>, %arg6: memref<8x32xf32, #tpu.memory_space<vmem>>, %arg7: memref<1x32xf32, #tpu.memory_space<vmem>>, %arg8: memref<1x32xf32, #tpu.memory_space<vmem>>) attributes {dimension_semantics = [#tpu.dimension_semantics<parallel>], iteration_bounds = array<i64: 1>, scalar_prefetch = 0 : i64, scratch_operands = 0 : i64, tpu.core_type = #tpu.core_type<tc>, window_params = [{transform_indices = @transform_0, window_bounds = array<i64: 8, 32>}, {transform_indices = @transform_1, window_bounds = array<i64: 1, 32>}, {transform_indices = @transform_2, window_bounds = array<i64: 1, 32>}, {transform_indices = @transform_3, window_bounds = array<i64: 1, 32>}, {transform_indices = @transform_4, window_bounds = array<i64: 1, 32>}, {transform_indices = @transform_5, window_bounds = array<i64: 8, 32>}, {transform_indices = @transform_6, window_bounds = array<i64: 1, 32>}, {transform_indices = @transform_7, window_bounds = array<i64: 1, 32>}]} {
    %c0 = arith.constant 0 : index
    %c0_0 = arith.constant 0 : index
    %0 = vector.load %arg1[%c0, %c0_0] : memref<8x32xf32, #tpu.memory_space<vmem>>, vector<8x32xf32>
    %cst = arith.constant dense<0.000000e+00> : vector<32xf32>
    %1 = vector.multi_reduction <add>, %0, %cst [0] : vector<8x32xf32> to vector<32xf32>
    %2 = vector.shape_cast %1 : vector<32xf32> to vector<1x32xf32>
    %3 = arith.mulf %0, %0 : vector<8x32xf32>
    %cst_1 = arith.constant dense<0.000000e+00> : vector<32xf32>
    %4 = vector.multi_reduction <add>, %3, %cst_1 [0] : vector<8x32xf32> to vector<32xf32>
    %5 = vector.shape_cast %4 : vector<32xf32> to vector<1x32xf32>
    %cst_2 = arith.constant 1.250000e-01 : f32
    %6 = vector.broadcast %cst_2 : f32 to vector<1x32xf32>
    %7 = arith.mulf %2, %6 : vector<1x32xf32>
    %8 = arith.mulf %7, %2 : vector<1x32xf32>
    %9 = arith.subf %5, %8 : vector<1x32xf32>
    %cst_3 = arith.constant 1.250000e-01 : f32
    %10 = vector.broadcast %cst_3 : f32 to vector<1x32xf32>
    %11 = arith.mulf %9, %10 : vector<1x32xf32>
    %cst_4 = arith.constant 9.99999974E-6 : f32
    %12 = vector.broadcast %cst_4 : f32 to vector<1x32xf32>
    %13 = arith.addf %11, %12 : vector<1x32xf32>
    %14 = math.rsqrt %13 : vector<1x32xf32>
    %c0_5 = arith.constant 0 : index
    %c0_6 = arith.constant 0 : index
    %15 = vector.load %arg4[%c0_5, %c0_6] : memref<1x32xf32, #tpu.memory_space<vmem>>, vector<1x32xf32>
    %c0_7 = arith.constant 0 : index
    %c0_8 = arith.constant 0 : index
    %16 = vector.load %arg5[%c0_7, %c0_8] : memref<1x32xf32, #tpu.memory_space<vmem>>, vector<1x32xf32>
    %17 = arith.mulf %15, %14 : vector<1x32xf32>
    %18 = arith.mulf %7, %17 : vector<1x32xf32>
    %19 = arith.subf %16, %18 : vector<1x32xf32>
    %20 = vector.broadcast %17 : vector<1x32xf32> to vector<8x32xf32>
    %21 = arith.mulf %0, %20 : vector<8x32xf32>
    %22 = vector.broadcast %19 : vector<1x32xf32> to vector<8x32xf32>
    %23 = arith.addf %21, %22 : vector<8x32xf32>
    %c0_9 = arith.constant 0 : index
    %c0_10 = arith.constant 0 : index
    %24 = vector.load %arg6[%c0_9, %c0_10] : memref<8x32xf32, #tpu.memory_space<vmem>>, vector<8x32xf32>
    tpu.vector_store %arg6[%c0_9, %c0_10], %23 {strides = array<i32>} : memref<8x32xf32, #tpu.memory_space<vmem>>, vector<8x32xf32>,
    %c0_11 = arith.constant 0 : index
    %c0_12 = arith.constant 0 : index
    %25 = vector.load %arg2[%c0_11, %c0_12] : memref<1x32xf32, #tpu.memory_space<vmem>>, vector<1x32xf32>
    %c0_13 = arith.constant 0 : index
    %c0_14 = arith.constant 0 : index
    %26 = vector.load %arg3[%c0_13, %c0_14] : memref<1x32xf32, #tpu.memory_space<vmem>>, vector<1x32xf32>
    %cst_15 = arith.constant 1.000000e+00 : f32
    %cst_16 = arith.constant 1.000000e-01 : f32
    %27 = arith.subf %cst_15, %cst_16 : f32
    %28 = vector.broadcast %27 : f32 to vector<1x32xf32>
    %29 = arith.mulf %25, %28 : vector<1x32xf32>
    %cst_17 = arith.constant 1.000000e-01 : f32
    %30 = vector.broadcast %cst_17 : f32 to vector<1x32xf32>
    %31 = arith.mulf %7, %30 : vector<1x32xf32>
    %32 = arith.addf %29, %31 : vector<1x32xf32>
    %c0_18 = arith.constant 0 : index
    %c0_19 = arith.constant 0 : index
    %33 = vector.load %arg7[%c0_18, %c0_19] : memref<1x32xf32, #tpu.memory_space<vmem>>, vector<1x32xf32>
    tpu.vector_store %arg7[%c0_18, %c0_19], %32 {strides = array<i32>} : memref<1x32xf32, #tpu.memory_space<vmem>>, vector<1x32xf32>,
    %cst_20 = arith.constant 1.000000e+00 : f32
    %cst_21 = arith.constant 1.000000e-01 : f32
    %34 = arith.subf %cst_20, %cst_21 : f32
    %35 = vector.broadcast %34 : f32 to vector<1x32xf32>
    %36 = arith.mulf %26, %35 : vector<1x32xf32>
    %cst_22 = arith.constant 1.000000e-01 : f32
    %37 = vector.broadcast %cst_22 : f32 to vector<1x32xf32>
    %38 = arith.mulf %11, %37 : vector<1x32xf32>
    %39 = arith.addf %36, %38 : vector<1x32xf32>
    %c0_23 = arith.constant 0 : index
    %c0_24 = arith.constant 0 : index
    %40 = vector.load %arg8[%c0_23, %c0_24] : memref<1x32xf32, #tpu.memory_space<vmem>>, vector<1x32xf32>
    tpu.vector_store %arg8[%c0_23, %c0_24], %39 {strides = array<i32>} : memref<1x32xf32, #tpu.memory_space<vmem>>, vector<1x32xf32>,
    return
  }
  func.func @transform_0(%arg0: i32) -> (i32, i32) {
    %c0_i32 = arith.constant 0 : i32
    %c0_i32_0 = arith.constant 0 : i32
    return %c0_i32, %arg0 : i32, i32
  }
  func.func @transform_1(%arg0: i32) -> (i32, i32) {
    %c0_i32 = arith.constant 0 : i32
    %c0_i32_0 = arith.constant 0 : i32
    return %c0_i32, %arg0 : i32, i32
  }
  func.func @transform_2(%arg0: i32) -> (i32, i32) {
    %c0_i32 = arith.constant 0 : i32
    %c0_i32_0 = arith.constant 0 : i32
    return %c0_i32, %arg0 : i32, i32
  }
  func.func @transform_3(%arg0: i32) -> (i32, i32) {
    %c0_i32 = arith.constant 0 : i32
    %c0_i32_0 = arith.constant 0 : i32
    return %c0_i32, %arg0 : i32, i32
  }
  func.func @transform_4(%arg0: i32) -> (i32, i32) {
    %c0_i32 = arith.constant 0 : i32
    %c0_i32_0 = arith.constant 0 : i32
    return %c0_i32, %arg0 : i32, i32
  }
  func.func @transform_5(%arg0: i32) -> (i32, i32) {
    %c0_i32 = arith.constant 0 : i32
    %c0_i32_0 = arith.constant 0 : i32
    return %c0_i32, %arg0 : i32, i32
  }
  func.func @transform_6(%arg0: i32) -> (i32, i32) {
    %c0_i32 = arith.constant 0 : i32
    %c0_i32_0 = arith.constant 0 : i32
    return %c0_i32, %arg0 : i32, i32
  }
  func.func @transform_7(%arg0: i32) -> (i32, i32) {
    %c0_i32 = arith.constant 0 : i32
    %c0_i32_0 = arith.constant 0 : i32
    return %c0_i32, %arg0 : i32, i32
  }
}

</mosaic_0001>

<llo_original>
// kernel: tpu_custom_call.1
$region0: #{tpu_custom_call.1}
  #allocation0 [shape = 'u32[]', space=smem, size = 0x4, offset = 0x4, fixed_abs, tag = 'smem constant byte address 0x4 - core index']
  #allocation1 [shape = 'u32[144,128]{1,0:T(1,128)}', space=vmem, size = 0x12000, scoped, tag = 'internal scratch']
  %s0 = inlined_call_operand.hbm [shape: f32[8,32], index: 0, kind: input, shape index: {}]
  %s1 = inlined_call_operand.vmem [shape: f32[1,32], index: 1, kind: input, shape index: {}]
  %s2 = inlined_call_operand.vmem [shape: f32[1,32], index: 2, kind: input, shape index: {}]
  %s3 = inlined_call_operand.vmem [shape: f32[1,32], index: 3, kind: input, shape index: {}]
  %s4 = inlined_call_operand.vmem [shape: f32[1,32], index: 4, kind: input, shape index: {}]
  %s5 = inlined_call_operand.hbm [shape: f32[8,32], index: 5, kind: output, shape index: {0}]
  %s6 = inlined_call_operand.hbm [shape: f32[1,32], index: 6, kind: output, shape index: {1}]
  %s7 = inlined_call_operand.hbm [shape: f32[1,32], index: 7, kind: output, shape index: {2}]
  %8 = xla_tuple %s5, %s6, %s7
  %s9 = sld [smem:[#allocation0]]
  $region50: #{tpu_custom_call.1} parent=0
    _
  %s11 = ssub.s32 1, %s9
  %s12 = scalar_select 0, %s11, %s9
  $region1: #{tpu_custom_call.1} parent=0
    #allocation2 [shape = 'u8[4096]{0}', space=vmem, size = 0x1000, scoped, tag = 'input window, operand 0, single buffered']
    #allocation3 [shape = 's32[1]{0}', space=sflag, size = 0x4, scoped, tag = 'scoped memory for tpu_custom_call.1']
    #allocation4 [shape = 's32[1]{0}', space=sflag, size = 0x4, scoped, tag = 'scoped memory for tpu_custom_call.1']
    #allocation5 [shape = 'u8[4096]{0}', space=vmem, size = 0x1000, scoped, tag = 'output window, operand 0, single buffered']
    #allocation6 [shape = 'u8[512]{0}', space=vmem, size = 0x400, scoped, tag = 'output window, operand 1, single buffered']
    #allocation7 [shape = 's32[1]{0}', space=sflag, size = 0x4, scoped, tag = 'scoped memory for tpu_custom_call.1']
    #allocation8 [shape = 'u8[512]{0}', space=vmem, size = 0x400, scoped, tag = 'output window, operand 2, single buffered']
    %13 = vsyncpa [#allocation3], 0
    %14 = vsyncpa [#allocation4], 0
    %15 = vsyncpa [#allocation7], 0
    // Predicated region
    $region2: #{tpu_custom_call.1} parent=1 // pred_check
      _
    $region3: #{tpu_custom_call.1} parent=1 // pred_check_branch
      %17 = sbr.rel (0) target = $region5
    $region4: #{tpu_custom_call.1} parent=1 // pred_region
      %s19 = ssub.s32 128, 128
      %20 = vsyncadd [#allocation3], %s19
      %s22 = sshll.u32 [#allocation2], 4
      %s23 = int_to_ptr.vmem [resolvable:$true] %s22
      %25 = dma.hbm_to_vmem [thread:$0]  %s0, 128, %s23, [#allocation3]
    $region5: #{tpu_custom_call.1} parent=1 // pred_fallthru
      _
    // Predicated region
    $region6: #{tpu_custom_call.1} parent=1 // pred_check
      _
    $region7: #{tpu_custom_call.1} parent=1 // pred_check_branch
      %27 = sbr.rel (0) target = $region9
    $region8: #{tpu_custom_call.1} parent=1 // pred_region
      _
    $region9: #{tpu_custom_call.1} parent=1 // pred_fallthru
      _
    // Predicated region
    $region10: #{tpu_custom_call.1} parent=1 // pred_check
      _
    $region11: #{tpu_custom_call.1} parent=1 // pred_check_branch
      %29 = sbr.rel (0) target = $region13
    $region12: #{tpu_custom_call.1} parent=1 // pred_region
      _
    $region13: #{tpu_custom_call.1} parent=1 // pred_fallthru
      _
    // Predicated region
    $region14: #{tpu_custom_call.1} parent=1 // pred_check
      _
    $region15: #{tpu_custom_call.1} parent=1 // pred_check_branch
      %31 = sbr.rel (0) target = $region17
    $region16: #{tpu_custom_call.1} parent=1 // pred_region
      _
    $region17: #{tpu_custom_call.1} parent=1 // pred_fallthru
      _
    // Predicated region
    $region18: #{tpu_custom_call.1} parent=1 // pred_check
      _
    $region19: #{tpu_custom_call.1} parent=1 // pred_check_branch
      %33 = sbr.rel (0) target = $region21
    $region20: #{tpu_custom_call.1} parent=1 // pred_region
      _
    $region21: #{tpu_custom_call.1} parent=1 // pred_fallthru
      _
    // Predicated region
    $region22: #{tpu_custom_call.1} parent=1 // pred_check
      _
    $region23: #{tpu_custom_call.1} parent=1 // pred_check_branch
      %35 = sbr.rel (0) target = $region25
    $region24: #{tpu_custom_call.1} parent=1 // pred_region
      %36 = dma.done [#allocation3], 128
    $region25: #{tpu_custom_call.1} parent=1 // pred_fallthru
      _
    %v37 = vld [vmem:[#allocation2] sm:$0xff]
    %vm38 = vcmask 261120
    %v39 = vsel %vm38, %v37, 0.0
    %v40 = vrot.slane %v39, 4
    %v41 = vadd.f32 %v39, %v40
    %v42 = vrot.slane %v41, 2
    %v43 = vadd.f32 %v41, %v42
    %v44 = vrot.slane %v43, 1
    %v45 = vadd.f32 %v43, %v44
    %v46 = vmul.f32 %v37, %v37
    %v47 = vsel %vm38, %v46, 0.0
    %v48 = vrot.slane %v47, 4
    %v49 = vadd.f32 %v47, %v48
    %v50 = vrot.slane %v49, 2
    %v51 = vadd.f32 %v49, %v50
    %v52 = vrot.slane %v51, 1
    %v53 = vadd.f32 %v51, %v52
    %v54 = vmul.f32 %v45, 0.125
    %v55 = vmul.f32 %v54, %v45
    %v56 = vsub.f32 %v53, %v55
    %v57 = vmul.f32 %v56, 0.125
    %v58 = vadd.f32 %v57, 1e-05
    %v59 = vrsqrt.pop %v58
    %v60 = vld [vmem:[%s3] sm:$0x1]
    %v61 = vld [vmem:[%s4] sm:$0x1]
    %v62 = vmul.f32 %v60, %v59
    %v63 = vmul.f32 %v54, %v62
    %v64 = vsub.f32 %v61, %v63
    %v66 = vlaneseq
    %v67 = vshrl.u32 %v66, 7
    %v68 = vsub.s32 0, %v67
    %v69 = vrot.slane %v62, %v68
    %v71 = vmul.f32 %v37, %v69
    %v73 = vlaneseq
    %v74 = vshrl.u32 %v73, 7
    %v75 = vsub.s32 0, %v74
    %v76 = vrot.slane %v64, %v75
    %v78 = vadd.f32 %v71, %v76
    %79 = vst.msk [vmem:[#allocation5] sm:$0xff] %vm38, %v78
    %v80 = vld [vmem:[%s1] sm:$0x1]
    %v81 = vld [vmem:[%s2] sm:$0x1]
    %v82 = vmul.f32 %v80, 0.9
    %v83 = vmul.f32 %v54, 0.1
    %v84 = vadd.f32 %v82, %v83
    %vm85 = vcmask 253952
    %86 = vst.msk [vmem:[#allocation6] sm:$0x1] %vm85, %v84
    %v87 = vmul.f32 %v81, 0.9
    %v88 = vmul.f32 %v57, 0.1
    %v89 = vadd.f32 %v87, %v88
    %90 = vst.msk [vmem:[#allocation8] sm:$0x1] %vm85, %v89
    // Predicated region
    $region26: #{tpu_custom_call.1} parent=1 // pred_check
      _
    $region27: #{tpu_custom_call.1} parent=1 // pred_check_branch
      %92 = sbr.rel (0) target = $region29
    $region28: #{tpu_custom_call.1} parent=1 // pred_region
      %s94 = ssub.s32 128, 128
      %95 = vsyncadd [#allocation4], %s94
      %s97 = sshll.u32 [#allocation5], 4
      %s98 = int_to_ptr.vmem [resolvable:$true] %s97
      %100 = dma.vmem_to_hbm [thread:$0]  %s98, 128, %s5, [#allocation4]
    $region29: #{tpu_custom_call.1} parent=1 // pred_fallthru
      _
    // Predicated region
    $region30: #{tpu_custom_call.1} parent=1 // pred_check
      _
    $region31: #{tpu_custom_call.1} parent=1 // pred_check_branch
      %102 = sbr.rel (0) target = $region33
    $region32: #{tpu_custom_call.1} parent=1 // pred_region
      %s104 = ssub.s32 16, 16
      %105 = vsyncadd [#allocation7], %s104
      %s107 = sshll.u32 [#allocation6], 4
      %s108 = int_to_ptr.vmem [resolvable:$true] %s107
      %110 = dma.vmem_to_hbm [thread:$0]  %s108, 16, %s6, [#allocation7]
    $region33: #{tpu_custom_call.1} parent=1 // pred_fallthru
      _
    // Predicated region
    $region34: #{tpu_custom_call.1} parent=1 // pred_check
      _
    $region35: #{tpu_custom_call.1} parent=1 // pred_check_branch
      %112 = sbr.rel (0) target = $region37
    $region36: #{tpu_custom_call.1} parent=1 // pred_region
      %s114 = ssub.s32 16, 16
      %115 = vsyncadd [#allocation7], %s114
      %s117 = sshll.u32 [#allocation8], 4
      %s118 = int_to_ptr.vmem [resolvable:$true] %s117
      %120 = dma.vmem_to_hbm [thread:$0]  %s118, 16, %s7, [#allocation7]
    $region37: #{tpu_custom_call.1} parent=1 // pred_fallthru
      _
    // Predicated region
    $region38: #{tpu_custom_call.1} parent=1 // pred_check
      _
    $region39: #{tpu_custom_call.1} parent=1 // pred_check_branch
      %122 = sbr.rel (0) target = $region41
    $region40: #{tpu_custom_call.1} parent=1 // pred_region
      %123 = dma.done [#allocation4], 128
    $region41: #{tpu_custom_call.1} parent=1 // pred_fallthru
      _
    // Predicated region
    $region42: #{tpu_custom_call.1} parent=1 // pred_check
      _
    $region43: #{tpu_custom_call.1} parent=1 // pred_check_branch
      %125 = sbr.rel (0) target = $region45
    $region44: #{tpu_custom_call.1} parent=1 // pred_region
      %126 = dma.done [#allocation7], 16
    $region45: #{tpu_custom_call.1} parent=1 // pred_fallthru
      _
    // Predicated region
    $region46: #{tpu_custom_call.1} parent=1 // pred_check
      _
    $region47: #{tpu_custom_call.1} parent=1 // pred_check_branch
      %128 = sbr.rel (0) target = $region49
    $region48: #{tpu_custom_call.1} parent=1 // pred_region
      %129 = dma.done [#allocation7], 16
    $region49: #{tpu_custom_call.1} parent=1 // pred_fallthru
      _
    %130 = vsyncpa [#allocation3], 1
    %131 = vsyncpa [#allocation4], 1
    %132 = vsyncpa [#allocation7], 1

</llo_original>
